<compile_context>
chip_gen: v5e
topology: v5e:2x2
jax: 0.10.0
libtpu: 0.0.40
codegen_flags: <defaults>
</compile_context>

<pallas_src>
import numpy as np
import jax
import jax.numpy as jnp
from jax.experimental import pallas as pl
from jax.experimental.pallas import tpu as pltpu

# ---- efficient-KAN (KANLinear) default hyperparameters -----------------------
GRID_SIZE = 5
SPLINE_ORDER = 3
GRID_RANGE = (-1.0, 1.0)
NUM_COEFF = GRID_SIZE + SPLINE_ORDER      # 8 spline basis functions per feature
NUM_FEATS = NUM_COEFF + 1                 # + 1 SiLU base branch


def _grid_values():
    h = (GRID_RANGE[1] - GRID_RANGE[0]) / GRID_SIZE
    return tuple(float(j * h + GRID_RANGE[0])
                 for j in range(-SPLINE_ORDER, GRID_SIZE + SPLINE_ORDER + 1))


GRID_VALS = _grid_values()                # 12 knots (identical for all features)


# ---- in-kernel compute --------------------------------------------------------
def _silu(x):
    # sigmoid via tanh: keeps the transcendental on the EUP, no VALU divide.
    return x * (0.5 * jnp.tanh(0.5 * x) + 0.5)


def _b_spline_bases(x):
    """Uniform-grid B-spline bases of degree SPLINE_ORDER, fully unrolled.

    x: (in, T) -> list of NUM_COEFF arrays, each (in, T).

    Equals the Cox-de Boor recursion used by efficient-KAN (same piecewise
    polynomials, exact zeros outside the support):
      * degree-1 hats computed directly:  hat_j(u) = max(0, 1 - |u - (j+1)|)
        with u = (x - g0)/h, skipping the degree-0 indicator level,
      * degrees 2..p via the recursion with constant knot differences folded
        into precomputed Python-float scalars.
    """
    h = (GRID_RANGE[1] - GRID_RANGE[0]) / GRID_SIZE
    g0 = GRID_VALS[0]
    n_knots = len(GRID_VALS)                          # 12
    u = (x - g0) * (1.0 / h)                          # knot-normalized coord

    # Degree-1 hat bases (support [g[j], g[j+2]], peak at g[j+1]).
    bases = [jnp.maximum(1.0 - jnp.abs(u - float(j + 1)), 0.0)
             for j in range(n_knots - 2)]             # 10 bases

    # Degrees 2..SPLINE_ORDER: (x - g[j]) / (g[j+k] - g[j]) = u/k - j/k.
    for k in range(2, SPLINE_ORDER + 1):
        uk = u * (1.0 / k)
        bases = [(uk - float(j) / k) * bases[j]
                 + (float(j + k + 1) / k - uk) * bases[j + 1]
                 for j in range(n_knots - 1 - k)]
    return bases                                      # NUM_COEFF = 8 bases


def _kan_layer(xT, w_cat):
    """xT:(in, T), w_cat:(out, in*NUM_FEATS) -> (out, T) f32, single MXU dot."""
    feats = jnp.concatenate([_silu(xT)] + _b_spline_bases(xT), axis=0)   # (in*9, T)
    return jnp.dot(w_cat, feats, preferred_element_type=jnp.float32)     # (out, T)


def _ekan_kernel(x_ref, w1_ref, w2_ref, o_ref):
    h = _kan_layer(x_ref[...], w1_ref[...])       # layer 1: koopman -> hidden
    o_ref[...] = _kan_layer(h, w2_ref[...])       # layer 2: hidden  -> latent


# ---- wrapper ------------------------------------------------------------------
def _round_up(n, m):
    return ((n + m - 1) // m) * m


def parametrization_network_ekan_forward(x, params, *, tile_n=512):
    orig_shape = x.shape
    kdim = orig_shape[-1]
    w1, w2 = params                          # (hidden, kdim*9), (latent, hidden*9)
    hidden = w1.shape[0]
    latent = w2.shape[0]

    x2 = x.reshape(-1, kdim).astype(jnp.float32)
    n = x2.shape[0]
    # Lane-dense row tiling: rows (batch*seq) sit on the 128-lane axis.
    t = tile_n if n >= tile_n else _round_up(max(n, 1), 128)
    n_pad = _round_up(n, t)
    if n_pad != n:
        x2 = jnp.pad(x2, ((0, n_pad - n), (0, 0)))    # zero rows, sliced off below
    xT = x2.T                                         # (kdim, n_pad)

    out_t = pl.pallas_call(
        _ekan_kernel,
        out_shape=jax.ShapeDtypeStruct((latent, n_pad), jnp.float32),
        grid_spec=pltpu.PrefetchScalarGridSpec(
            num_scalar_prefetch=0,
            grid=(n_pad // t,),
            in_specs=[
                pl.BlockSpec((kdim, t), lambda i: (0, i)),                     # x tile
                pl.BlockSpec((hidden, kdim * NUM_FEATS), lambda i: (0, 0)),    # W1 (full, fetched once)
                pl.BlockSpec((latent, hidden * NUM_FEATS), lambda i: (0, 0)),  # W2 (full, fetched once)
            ],
            out_specs=pl.BlockSpec((latent, t), lambda i: (0, i)),
        ),
        compiler_params=pltpu.CompilerParams(
            dimension_semantics=("parallel",)),        # megacore sharding on v7x
    )(xT, w1, w2)

    out = out_t[:, :n].T                               # back to rows-first
    return out.reshape(*orig_shape[:-1], latent)


# ---- deterministic parameter init (synthetic; mirrors KANLinear shapes) -------
def init_params(key, koopman_dim, hidden_dim, latent):
    """Returns [W1_cat, W2_cat]; W_cat = concat([base_w, spline_w[:,:,0..C-1]], axis=1)."""
    dims = [koopman_dim, hidden_dim, latent]
    params = []
    for fin, fout in zip(dims[:-1], dims[1:]):
        k1, k2, k3, key = jax.random.split(key, 4)
        bound = float(np.sqrt(6.0 / fin))
        base_w = jax.random.uniform(k1, (fout, fin), jnp.float32, -bound, bound)
        spline_w = 0.1 * jax.random.normal(k2, (fout, fin, NUM_COEFF), jnp.float32)
        spline_scaler = jax.random.uniform(k3, (fout, fin), jnp.float32, -bound, bound)
        scaled = spline_w * spline_scaler[..., None]                 # (out, in, C)
        w_cat = jnp.concatenate(
            [base_w] + [scaled[:, :, c] for c in range(NUM_COEFF)], axis=1)  # (out, in*9)
        params.append(w_cat)
    return params


# ---- pure-JAX reference (PyTorch efficient-KAN formulation) -------------------
def _ref_kan_linear(x, w_cat, fin):
    base_w = w_cat[:, :fin]                                          # (out, fin)
    base = jnp.dot(x * jax.nn.sigmoid(x), base_w.T, precision="highest")
    g = jnp.asarray(GRID_VALS, jnp.float32)
    xg = x[:, :, None]
    bases = ((xg >= g[:-1]) & (xg < g[1:])).astype(x.dtype)
    for k in range(1, SPLINE_ORDER + 1):
        bases = ((xg - g[: -(k + 1)]) / (g[k:-1] - g[: -(k + 1)]) * bases[:, :, :-1]
                 + (g[k + 1:] - xg) / (g[k + 1:] - g[1:-k]) * bases[:, :, 1:])
    out = base
    for c in range(NUM_COEFF):
        w_c = w_cat[:, fin * (c + 1): fin * (c + 2)]                 # (out, fin)
        out = out + jnp.dot(bases[:, :, c], w_c.T, precision="highest")
    return out


def ref_forward(x, params):
    orig_shape = x.shape
    kdim = orig_shape[-1]
    h = x.reshape(-1, kdim).astype(jnp.float32)
    w1, w2 = params
    h = _ref_kan_linear(h, w1, kdim)
    h = _ref_kan_linear(h, w2, w1.shape[0])
    return h.reshape(*orig_shape[:-1], w2.shape[0])


if __name__ == "__main__":
    koopman_dim, hidden_dim, latent = 8, 32, 16
    key = jax.random.PRNGKey(0)
    kx, kp = jax.random.split(key)
    # (batch=2, seq=8, koopman_dim=8) feature-last input
    x = jax.random.normal(kx, (2, 8, koopman_dim), jnp.float32)
    params = init_params(kp, koopman_dim, hidden_dim, latent)

    y = parametrization_network_ekan_forward(x, params)
    y = jax.block_until_ready(y)

    y_ref = ref_forward(x, params)
    assert y.shape == (2, 8, latent)
    np.testing.assert_allclose(np.asarray(y), np.asarray(y_ref), rtol=1e-4, atol=1e-4)
    print("KERNEL_OK")
</pallas_src>

<mosaic_0001>
module attributes {stable_mosaic.version = 11 : i64} {
  func.func @_ekan_kernel(%arg0: i32, %arg1: memref<8x128xf32, #tpu.memory_space<vmem>>, %arg2: memref<32x72xf32, #tpu.memory_space<vmem>>, %arg3: memref<16x288xf32, #tpu.memory_space<vmem>>, %arg4: memref<16x128xf32, #tpu.memory_space<vmem>>) attributes {dimension_semantics = [#tpu.dimension_semantics<parallel>], iteration_bounds = array<i64: 1>, scalar_prefetch = 0 : i64, scratch_operands = 0 : i64, tpu.core_type = #tpu.core_type<tc>, window_params = [{transform_indices = @transform_0, window_bounds = array<i64: 8, 128>}, {pipeline_mode = #tpu.pipeline_mode<synchronous>, transform_indices = @transform_1, window_bounds = array<i64: 32, 72>}, {pipeline_mode = #tpu.pipeline_mode<synchronous>, transform_indices = @transform_2, window_bounds = array<i64: 16, 288>}, {transform_indices = @transform_3, window_bounds = array<i64: 16, 128>}]} {
    %c0 = arith.constant 0 : index
    %c0_0 = arith.constant 0 : index
    %0 = vector.load %arg1[%c0, %c0_0] : memref<8x128xf32, #tpu.memory_space<vmem>>, vector<8x128xf32>
    %c0_1 = arith.constant 0 : index
    %c0_2 = arith.constant 0 : index
    %1 = vector.load %arg2[%c0_1, %c0_2] : memref<32x72xf32, #tpu.memory_space<vmem>>, vector<32x72xf32>
    %cst = arith.constant 5.000000e-01 : f32
    %2 = vector.broadcast %cst : f32 to vector<8x128xf32>
    %3 = arith.mulf %2, %0 : vector<8x128xf32>
    %4 = math.tanh %3 : vector<8x128xf32>
    %cst_3 = arith.constant 5.000000e-01 : f32
    %5 = vector.broadcast %cst_3 : f32 to vector<8x128xf32>
    %6 = arith.mulf %5, %4 : vector<8x128xf32>
    %cst_4 = arith.constant 5.000000e-01 : f32
    %7 = vector.broadcast %cst_4 : f32 to vector<8x128xf32>
    %8 = arith.addf %6, %7 : vector<8x128xf32>
    %9 = arith.mulf %0, %8 : vector<8x128xf32>
    %cst_5 = arith.constant -2.200000e+00 : f32
    %10 = vector.broadcast %cst_5 : f32 to vector<8x128xf32>
    %11 = arith.subf %0, %10 : vector<8x128xf32>
    %cst_6 = arith.constant 2.500000e+00 : f32
    %12 = vector.broadcast %cst_6 : f32 to vector<8x128xf32>
    %13 = arith.mulf %11, %12 : vector<8x128xf32>
    %cst_7 = arith.constant 1.000000e+00 : f32
    %14 = vector.broadcast %cst_7 : f32 to vector<8x128xf32>
    %15 = arith.subf %13, %14 : vector<8x128xf32>
    %16 = math.absf %15 : vector<8x128xf32>
    %cst_8 = arith.constant 1.000000e+00 : f32
    %17 = vector.broadcast %cst_8 : f32 to vector<8x128xf32>
    %18 = arith.subf %17, %16 : vector<8x128xf32>
    %cst_9 = arith.constant 0.000000e+00 : f32
    %19 = vector.broadcast %cst_9 : f32 to vector<8x128xf32>
    %20 = arith.maximumf %18, %19 : vector<8x128xf32>
    %cst_10 = arith.constant 2.000000e+00 : f32
    %21 = vector.broadcast %cst_10 : f32 to vector<8x128xf32>
    %22 = arith.subf %13, %21 : vector<8x128xf32>
    %23 = math.absf %22 : vector<8x128xf32>
    %cst_11 = arith.constant 1.000000e+00 : f32
    %24 = vector.broadcast %cst_11 : f32 to vector<8x128xf32>
    %25 = arith.subf %24, %23 : vector<8x128xf32>
    %cst_12 = arith.constant 0.000000e+00 : f32
    %26 = vector.broadcast %cst_12 : f32 to vector<8x128xf32>
    %27 = arith.maximumf %25, %26 : vector<8x128xf32>
    %cst_13 = arith.constant 3.000000e+00 : f32
    %28 = vector.broadcast %cst_13 : f32 to vector<8x128xf32>
    %29 = arith.subf %13, %28 : vector<8x128xf32>
    %30 = math.absf %29 : vector<8x128xf32>
    %cst_14 = arith.constant 1.000000e+00 : f32
    %31 = vector.broadcast %cst_14 : f32 to vector<8x128xf32>
    %32 = arith.subf %31, %30 : vector<8x128xf32>
    %cst_15 = arith.constant 0.000000e+00 : f32
    %33 = vector.broadcast %cst_15 : f32 to vector<8x128xf32>
    %34 = arith.maximumf %32, %33 : vector<8x128xf32>
    %cst_16 = arith.constant 4.000000e+00 : f32
    %35 = vector.broadcast %cst_16 : f32 to vector<8x128xf32>
    %36 = arith.subf %13, %35 : vector<8x128xf32>
    %37 = math.absf %36 : vector<8x128xf32>
    %cst_17 = arith.constant 1.000000e+00 : f32
    %38 = vector.broadcast %cst_17 : f32 to vector<8x128xf32>
    %39 = arith.subf %38, %37 : vector<8x128xf32>
    %cst_18 = arith.constant 0.000000e+00 : f32
    %40 = vector.broadcast %cst_18 : f32 to vector<8x128xf32>
    %41 = arith.maximumf %39, %40 : vector<8x128xf32>
    %cst_19 = arith.constant 5.000000e+00 : f32
    %42 = vector.broadcast %cst_19 : f32 to vector<8x128xf32>
    %43 = arith.subf %13, %42 : vector<8x128xf32>
    %44 = math.absf %43 : vector<8x128xf32>
    %cst_20 = arith.constant 1.000000e+00 : f32
    %45 = vector.broadcast %cst_20 : f32 to vector<8x128xf32>
    %46 = arith.subf %45, %44 : vector<8x128xf32>
    %cst_21 = arith.constant 0.000000e+00 : f32
    %47 = vector.broadcast %cst_21 : f32 to vector<8x128xf32>
    %48 = arith.maximumf %46, %47 : vector<8x128xf32>
    %cst_22 = arith.constant 6.000000e+00 : f32
    %49 = vector.broadcast %cst_22 : f32 to vector<8x128xf32>
    %50 = arith.subf %13, %49 : vector<8x128xf32>
    %51 = math.absf %50 : vector<8x128xf32>
    %cst_23 = arith.constant 1.000000e+00 : f32
    %52 = vector.broadcast %cst_23 : f32 to vector<8x128xf32>
    %53 = arith.subf %52, %51 : vector<8x128xf32>
    %cst_24 = arith.constant 0.000000e+00 : f32
    %54 = vector.broadcast %cst_24 : f32 to vector<8x128xf32>
    %55 = arith.maximumf %53, %54 : vector<8x128xf32>
    %cst_25 = arith.constant 7.000000e+00 : f32
    %56 = vector.broadcast %cst_25 : f32 to vector<8x128xf32>
    %57 = arith.subf %13, %56 : vector<8x128xf32>
    %58 = math.absf %57 : vector<8x128xf32>
    %cst_26 = arith.constant 1.000000e+00 : f32
    %59 = vector.broadcast %cst_26 : f32 to vector<8x128xf32>
    %60 = arith.subf %59, %58 : vector<8x128xf32>
    %cst_27 = arith.constant 0.000000e+00 : f32
    %61 = vector.broadcast %cst_27 : f32 to vector<8x128xf32>
    %62 = arith.maximumf %60, %61 : vector<8x128xf32>
    %cst_28 = arith.constant 8.000000e+00 : f32
    %63 = vector.broadcast %cst_28 : f32 to vector<8x128xf32>
    %64 = arith.subf %13, %63 : vector<8x128xf32>
    %65 = math.absf %64 : vector<8x128xf32>
    %cst_29 = arith.constant 1.000000e+00 : f32
    %66 = vector.broadcast %cst_29 : f32 to vector<8x128xf32>
    %67 = arith.subf %66, %65 : vector<8x128xf32>
    %cst_30 = arith.constant 0.000000e+00 : f32
    %68 = vector.broadcast %cst_30 : f32 to vector<8x128xf32>
    %69 = arith.maximumf %67, %68 : vector<8x128xf32>
    %cst_31 = arith.constant 9.000000e+00 : f32
    %70 = vector.broadcast %cst_31 : f32 to vector<8x128xf32>
    %71 = arith.subf %13, %70 : vector<8x128xf32>
    %72 = math.absf %71 : vector<8x128xf32>
    %cst_32 = arith.constant 1.000000e+00 : f32
    %73 = vector.broadcast %cst_32 : f32 to vector<8x128xf32>
    %74 = arith.subf %73, %72 : vector<8x128xf32>
    %cst_33 = arith.constant 0.000000e+00 : f32
    %75 = vector.broadcast %cst_33 : f32 to vector<8x128xf32>
    %76 = arith.maximumf %74, %75 : vector<8x128xf32>
    %cst_34 = arith.constant 1.000000e+01 : f32
    %77 = vector.broadcast %cst_34 : f32 to vector<8x128xf32>
    %78 = arith.subf %13, %77 : vector<8x128xf32>
    %79 = math.absf %78 : vector<8x128xf32>
    %cst_35 = arith.constant 1.000000e+00 : f32
    %80 = vector.broadcast %cst_35 : f32 to vector<8x128xf32>
    %81 = arith.subf %80, %79 : vector<8x128xf32>
    %cst_36 = arith.constant 0.000000e+00 : f32
    %82 = vector.broadcast %cst_36 : f32 to vector<8x128xf32>
    %83 = arith.maximumf %81, %82 : vector<8x128xf32>
    %cst_37 = arith.constant 5.000000e-01 : f32
    %84 = vector.broadcast %cst_37 : f32 to vector<8x128xf32>
    %85 = arith.mulf %13, %84 : vector<8x128xf32>
    %cst_38 = arith.constant 0.000000e+00 : f32
    %86 = vector.broadcast %cst_38 : f32 to vector<8x128xf32>
    %87 = arith.subf %85, %86 : vector<8x128xf32>
    %88 = arith.mulf %87, %20 : vector<8x128xf32>
    %cst_39 = arith.constant 1.500000e+00 : f32
    %89 = vector.broadcast %cst_39 : f32 to vector<8x128xf32>
    %90 = arith.subf %89, %85 : vector<8x128xf32>
    %91 = arith.mulf %90, %27 : vector<8x128xf32>
    %92 = arith.addf %88, %91 : vector<8x128xf32>
    %cst_40 = arith.constant 5.000000e-01 : f32
    %93 = vector.broadcast %cst_40 : f32 to vector<8x128xf32>
    %94 = arith.subf %85, %93 : vector<8x128xf32>
    %95 = arith.mulf %94, %27 : vector<8x128xf32>
    %cst_41 = arith.constant 2.000000e+00 : f32
    %96 = vector.broadcast %cst_41 : f32 to vector<8x128xf32>
    %97 = arith.subf %96, %85 : vector<8x128xf32>
    %98 = arith.mulf %97, %34 : vector<8x128xf32>
    %99 = arith.addf %95, %98 : vector<8x128xf32>
    %cst_42 = arith.constant 1.000000e+00 : f32
    %100 = vector.broadcast %cst_42 : f32 to vector<8x128xf32>
    %101 = arith.subf %85, %100 : vector<8x128xf32>
    %102 = arith.mulf %101, %34 : vector<8x128xf32>
    %cst_43 = arith.constant 2.500000e+00 : f32
    %103 = vector.broadcast %cst_43 : f32 to vector<8x128xf32>
    %104 = arith.subf %103, %85 : vector<8x128xf32>
    %105 = arith.mulf %104, %41 : vector<8x128xf32>
    %106 = arith.addf %102, %105 : vector<8x128xf32>
    %cst_44 = arith.constant 1.500000e+00 : f32
    %107 = vector.broadcast %cst_44 : f32 to vector<8x128xf32>
    %108 = arith.subf %85, %107 : vector<8x128xf32>
    %109 = arith.mulf %108, %41 : vector<8x128xf32>
    %cst_45 = arith.constant 3.000000e+00 : f32
    %110 = vector.broadcast %cst_45 : f32 to vector<8x128xf32>
    %111 = arith.subf %110, %85 : vector<8x128xf32>
    %112 = arith.mulf %111, %48 : vector<8x128xf32>
    %113 = arith.addf %109, %112 : vector<8x128xf32>
    %cst_46 = arith.constant 2.000000e+00 : f32
    %114 = vector.broadcast %cst_46 : f32 to vector<8x128xf32>
    %115 = arith.subf %85, %114 : vector<8x128xf32>
    %116 = arith.mulf %115, %48 : vector<8x128xf32>
    %cst_47 = arith.constant 3.500000e+00 : f32
    %117 = vector.broadcast %cst_47 : f32 to vector<8x128xf32>
    %118 = arith.subf %117, %85 : vector<8x128xf32>
    %119 = arith.mulf %118, %55 : vector<8x128xf32>
    %120 = arith.addf %116, %119 : vector<8x128xf32>
    %cst_48 = arith.constant 2.500000e+00 : f32
    %121 = vector.broadcast %cst_48 : f32 to vector<8x128xf32>
    %122 = arith.subf %85, %121 : vector<8x128xf32>
    %123 = arith.mulf %122, %55 : vector<8x128xf32>
    %cst_49 = arith.constant 4.000000e+00 : f32
    %124 = vector.broadcast %cst_49 : f32 to vector<8x128xf32>
    %125 = arith.subf %124, %85 : vector<8x128xf32>
    %126 = arith.mulf %125, %62 : vector<8x128xf32>
    %127 = arith.addf %123, %126 : vector<8x128xf32>
    %cst_50 = arith.constant 3.000000e+00 : f32
    %128 = vector.broadcast %cst_50 : f32 to vector<8x128xf32>
    %129 = arith.subf %85, %128 : vector<8x128xf32>
    %130 = arith.mulf %129, %62 : vector<8x128xf32>
    %cst_51 = arith.constant 4.500000e+00 : f32
    %131 = vector.broadcast %cst_51 : f32 to vector<8x128xf32>
    %132 = arith.subf %131, %85 : vector<8x128xf32>
    %133 = arith.mulf %132, %69 : vector<8x128xf32>
    %134 = arith.addf %130, %133 : vector<8x128xf32>
    %cst_52 = arith.constant 3.500000e+00 : f32
    %135 = vector.broadcast %cst_52 : f32 to vector<8x128xf32>
    %136 = arith.subf %85, %135 : vector<8x128xf32>
    %137 = arith.mulf %136, %69 : vector<8x128xf32>
    %cst_53 = arith.constant 5.000000e+00 : f32
    %138 = vector.broadcast %cst_53 : f32 to vector<8x128xf32>
    %139 = arith.subf %138, %85 : vector<8x128xf32>
    %140 = arith.mulf %139, %76 : vector<8x128xf32>
    %141 = arith.addf %137, %140 : vector<8x128xf32>
    %cst_54 = arith.constant 4.000000e+00 : f32
    %142 = vector.broadcast %cst_54 : f32 to vector<8x128xf32>
    %143 = arith.subf %85, %142 : vector<8x128xf32>
    %144 = arith.mulf %143, %76 : vector<8x128xf32>
    %cst_55 = arith.constant 5.500000e+00 : f32
    %145 = vector.broadcast %cst_55 : f32 to vector<8x128xf32>
    %146 = arith.subf %145, %85 : vector<8x128xf32>
    %147 = arith.mulf %146, %83 : vector<8x128xf32>
    %148 = arith.addf %144, %147 : vector<8x128xf32>
    %cst_56 = arith.constant 0.333333343 : f32
    %149 = vector.broadcast %cst_56 : f32 to vector<8x128xf32>
    %150 = arith.mulf %13, %149 : vector<8x128xf32>
    %cst_57 = arith.constant 0.000000e+00 : f32
    %151 = vector.broadcast %cst_57 : f32 to vector<8x128xf32>
    %152 = arith.subf %150, %151 : vector<8x128xf32>
    %153 = arith.mulf %152, %92 : vector<8x128xf32>
    %cst_58 = arith.constant 1.33333337 : f32
    %154 = vector.broadcast %cst_58 : f32 to vector<8x128xf32>
    %155 = arith.subf %154, %150 : vector<8x128xf32>
    %156 = arith.mulf %155, %99 : vector<8x128xf32>
    %157 = arith.addf %153, %156 : vector<8x128xf32>
    %cst_59 = arith.constant 0.333333343 : f32
    %158 = vector.broadcast %cst_59 : f32 to vector<8x128xf32>
    %159 = arith.subf %150, %158 : vector<8x128xf32>
    %160 = arith.mulf %159, %99 : vector<8x128xf32>
    %cst_60 = arith.constant 1.66666663 : f32
    %161 = vector.broadcast %cst_60 : f32 to vector<8x128xf32>
    %162 = arith.subf %161, %150 : vector<8x128xf32>
    %163 = arith.mulf %162, %106 : vector<8x128xf32>
    %164 = arith.addf %160, %163 : vector<8x128xf32>
    %cst_61 = arith.constant 0.666666686 : f32
    %165 = vector.broadcast %cst_61 : f32 to vector<8x128xf32>
    %166 = arith.subf %150, %165 : vector<8x128xf32>
    %167 = arith.mulf %166, %106 : vector<8x128xf32>
    %cst_62 = arith.constant 2.000000e+00 : f32
    %168 = vector.broadcast %cst_62 : f32 to vector<8x128xf32>
    %169 = arith.subf %168, %150 : vector<8x128xf32>
    %170 = arith.mulf %169, %113 : vector<8x128xf32>
    %171 = arith.addf %167, %170 : vector<8x128xf32>
    %cst_63 = arith.constant 1.000000e+00 : f32
    %172 = vector.broadcast %cst_63 : f32 to vector<8x128xf32>
    %173 = arith.subf %150, %172 : vector<8x128xf32>
    %174 = arith.mulf %173, %113 : vector<8x128xf32>
    %cst_64 = arith.constant 2.33333325 : f32
    %175 = vector.broadcast %cst_64 : f32 to vector<8x128xf32>
    %176 = arith.subf %175, %150 : vector<8x128xf32>
    %177 = arith.mulf %176, %120 : vector<8x128xf32>
    %178 = arith.addf %174, %177 : vector<8x128xf32>
    %cst_65 = arith.constant 1.33333337 : f32
    %179 = vector.broadcast %cst_65 : f32 to vector<8x128xf32>
    %180 = arith.subf %150, %179 : vector<8x128xf32>
    %181 = arith.mulf %180, %120 : vector<8x128xf32>
    %cst_66 = arith.constant 2.66666675 : f32
    %182 = vector.broadcast %cst_66 : f32 to vector<8x128xf32>
    %183 = arith.subf %182, %150 : vector<8x128xf32>
    %184 = arith.mulf %183, %127 : vector<8x128xf32>
    %185 = arith.addf %181, %184 : vector<8x128xf32>
    %cst_67 = arith.constant 1.66666663 : f32
    %186 = vector.broadcast %cst_67 : f32 to vector<8x128xf32>
    %187 = arith.subf %150, %186 : vector<8x128xf32>
    %188 = arith.mulf %187, %127 : vector<8x128xf32>
    %cst_68 = arith.constant 3.000000e+00 : f32
    %189 = vector.broadcast %cst_68 : f32 to vector<8x128xf32>
    %190 = arith.subf %189, %150 : vector<8x128xf32>
    %191 = arith.mulf %190, %134 : vector<8x128xf32>
    %192 = arith.addf %188, %191 : vector<8x128xf32>
    %cst_69 = arith.constant 2.000000e+00 : f32
    %193 = vector.broadcast %cst_69 : f32 to vector<8x128xf32>
    %194 = arith.subf %150, %193 : vector<8x128xf32>
    %195 = arith.mulf %194, %134 : vector<8x128xf32>
    %cst_70 = arith.constant 3.33333325 : f32
    %196 = vector.broadcast %cst_70 : f32 to vector<8x128xf32>
    %197 = arith.subf %196, %150 : vector<8x128xf32>
    %198 = arith.mulf %197, %141 : vector<8x128xf32>
    %199 = arith.addf %195, %198 : vector<8x128xf32>
    %cst_71 = arith.constant 2.33333325 : f32
    %200 = vector.broadcast %cst_71 : f32 to vector<8x128xf32>
    %201 = arith.subf %150, %200 : vector<8x128xf32>
    %202 = arith.mulf %201, %141 : vector<8x128xf32>
    %cst_72 = arith.constant 3.66666675 : f32
    %203 = vector.broadcast %cst_72 : f32 to vector<8x128xf32>
    %204 = arith.subf %203, %150 : vector<8x128xf32>
    %205 = arith.mulf %204, %148 : vector<8x128xf32>
    %206 = arith.addf %202, %205 : vector<8x128xf32>
    %207 = tpu.concatenate %9, %157, %164, %171, %178, %185, %192, %199, %206 in 0 : vector<8x128xf32>, vector<8x128xf32>, vector<8x128xf32>, vector<8x128xf32>, vector<8x128xf32>, vector<8x128xf32>, vector<8x128xf32>, vector<8x128xf32>, vector<8x128xf32> -> vector<72x128xf32>
    %cst_73 = arith.constant dense<0.000000e+00> : vector<32x128xf32>
    %208 = tpu.matmul %1, %207, %cst_73 {dimension_numbers = #tpu.dot_dimension_numbers<[1], [0], [0], [1], [0, 0, 1, 1], [], []>} : vector<32x72xf32>, vector<72x128xf32>, vector<32x128xf32> -> vector<32x128xf32>
    %c0_74 = arith.constant 0 : index
    %c0_75 = arith.constant 0 : index
    %209 = vector.load %arg3[%c0_74, %c0_75] : memref<16x288xf32, #tpu.memory_space<vmem>>, vector<16x288xf32>
    %cst_76 = arith.constant 5.000000e-01 : f32
    %210 = vector.broadcast %cst_76 : f32 to vector<32x128xf32>
    %211 = arith.mulf %210, %208 : vector<32x128xf32>
    %212 = math.tanh %211 : vector<32x128xf32>
    %cst_77 = arith.constant 5.000000e-01 : f32
    %213 = vector.broadcast %cst_77 : f32 to vector<32x128xf32>
    %214 = arith.mulf %213, %212 : vector<32x128xf32>
    %cst_78 = arith.constant 5.000000e-01 : f32
    %215 = vector.broadcast %cst_78 : f32 to vector<32x128xf32>
    %216 = arith.addf %214, %215 : vector<32x128xf32>
    %217 = arith.mulf %208, %216 : vector<32x128xf32>
    %cst_79 = arith.constant -2.200000e+00 : f32
    %218 = vector.broadcast %cst_79 : f32 to vector<32x128xf32>
    %219 = arith.subf %208, %218 : vector<32x128xf32>
    %cst_80 = arith.constant 2.500000e+00 : f32
    %220 = vector.broadcast %cst_80 : f32 to vector<32x128xf32>
    %221 = arith.mulf %219, %220 : vector<32x128xf32>
    %cst_81 = arith.constant 1.000000e+00 : f32
    %222 = vector.broadcast %cst_81 : f32 to vector<32x128xf32>
    %223 = arith.subf %221, %222 : vector<32x128xf32>
    %224 = math.absf %223 : vector<32x128xf32>
    %cst_82 = arith.constant 1.000000e+00 : f32
    %225 = vector.broadcast %cst_82 : f32 to vector<32x128xf32>
    %226 = arith.subf %225, %224 : vector<32x128xf32>
    %cst_83 = arith.constant 0.000000e+00 : f32
    %227 = vector.broadcast %cst_83 : f32 to vector<32x128xf32>
    %228 = arith.maximumf %226, %227 : vector<32x128xf32>
    %cst_84 = arith.constant 2.000000e+00 : f32
    %229 = vector.broadcast %cst_84 : f32 to vector<32x128xf32>
    %230 = arith.subf %221, %229 : vector<32x128xf32>
    %231 = math.absf %230 : vector<32x128xf32>
    %cst_85 = arith.constant 1.000000e+00 : f32
    %232 = vector.broadcast %cst_85 : f32 to vector<32x128xf32>
    %233 = arith.subf %232, %231 : vector<32x128xf32>
    %cst_86 = arith.constant 0.000000e+00 : f32
    %234 = vector.broadcast %cst_86 : f32 to vector<32x128xf32>
    %235 = arith.maximumf %233, %234 : vector<32x128xf32>
    %cst_87 = arith.constant 3.000000e+00 : f32
    %236 = vector.broadcast %cst_87 : f32 to vector<32x128xf32>
    %237 = arith.subf %221, %236 : vector<32x128xf32>
    %238 = math.absf %237 : vector<32x128xf32>
    %cst_88 = arith.constant 1.000000e+00 : f32
    %239 = vector.broadcast %cst_88 : f32 to vector<32x128xf32>
    %240 = arith.subf %239, %238 : vector<32x128xf32>
    %cst_89 = arith.constant 0.000000e+00 : f32
    %241 = vector.broadcast %cst_89 : f32 to vector<32x128xf32>
    %242 = arith.maximumf %240, %241 : vector<32x128xf32>
    %cst_90 = arith.constant 4.000000e+00 : f32
    %243 = vector.broadcast %cst_90 : f32 to vector<32x128xf32>
    %244 = arith.subf %221, %243 : vector<32x128xf32>
    %245 = math.absf %244 : vector<32x128xf32>
    %cst_91 = arith.constant 1.000000e+00 : f32
    %246 = vector.broadcast %cst_91 : f32 to vector<32x128xf32>
    %247 = arith.subf %246, %245 : vector<32x128xf32>
    %cst_92 = arith.constant 0.000000e+00 : f32
    %248 = vector.broadcast %cst_92 : f32 to vector<32x128xf32>
    %249 = arith.maximumf %247, %248 : vector<32x128xf32>
    %cst_93 = arith.constant 5.000000e+00 : f32
    %250 = vector.broadcast %cst_93 : f32 to vector<32x128xf32>
    %251 = arith.subf %221, %250 : vector<32x128xf32>
    %252 = math.absf %251 : vector<32x128xf32>
    %cst_94 = arith.constant 1.000000e+00 : f32
    %253 = vector.broadcast %cst_94 : f32 to vector<32x128xf32>
    %254 = arith.subf %253, %252 : vector<32x128xf32>
    %cst_95 = arith.constant 0.000000e+00 : f32
    %255 = vector.broadcast %cst_95 : f32 to vector<32x128xf32>
    %256 = arith.maximumf %254, %255 : vector<32x128xf32>
    %cst_96 = arith.constant 6.000000e+00 : f32
    %257 = vector.broadcast %cst_96 : f32 to vector<32x128xf32>
    %258 = arith.subf %221, %257 : vector<32x128xf32>
    %259 = math.absf %258 : vector<32x128xf32>
    %cst_97 = arith.constant 1.000000e+00 : f32
    %260 = vector.broadcast %cst_97 : f32 to vector<32x128xf32>
    %261 = arith.subf %260, %259 : vector<32x128xf32>
    %cst_98 = arith.constant 0.000000e+00 : f32
    %262 = vector.broadcast %cst_98 : f32 to vector<32x128xf32>
    %263 = arith.maximumf %261, %262 : vector<32x128xf32>
    %cst_99 = arith.constant 7.000000e+00 : f32
    %264 = vector.broadcast %cst_99 : f32 to vector<32x128xf32>
    %265 = arith.subf %221, %264 : vector<32x128xf32>
    %266 = math.absf %265 : vector<32x128xf32>
    %cst_100 = arith.constant 1.000000e+00 : f32
    %267 = vector.broadcast %cst_100 : f32 to vector<32x128xf32>
    %268 = arith.subf %267, %266 : vector<32x128xf32>
    %cst_101 = arith.constant 0.000000e+00 : f32
    %269 = vector.broadcast %cst_101 : f32 to vector<32x128xf32>
    %270 = arith.maximumf %268, %269 : vector<32x128xf32>
    %cst_102 = arith.constant 8.000000e+00 : f32
    %271 = vector.broadcast %cst_102 : f32 to vector<32x128xf32>
    %272 = arith.subf %221, %271 : vector<32x128xf32>
    %273 = math.absf %272 : vector<32x128xf32>
    %cst_103 = arith.constant 1.000000e+00 : f32
    %274 = vector.broadcast %cst_103 : f32 to vector<32x128xf32>
    %275 = arith.subf %274, %273 : vector<32x128xf32>
    %cst_104 = arith.constant 0.000000e+00 : f32
    %276 = vector.broadcast %cst_104 : f32 to vector<32x128xf32>
    %277 = arith.maximumf %275, %276 : vector<32x128xf32>
    %cst_105 = arith.constant 9.000000e+00 : f32
    %278 = vector.broadcast %cst_105 : f32 to vector<32x128xf32>
    %279 = arith.subf %221, %278 : vector<32x128xf32>
    %280 = math.absf %279 : vector<32x128xf32>
    %cst_106 = arith.constant 1.000000e+00 : f32
    %281 = vector.broadcast %cst_106 : f32 to vector<32x128xf32>
    %282 = arith.subf %281, %280 : vector<32x128xf32>
    %cst_107 = arith.constant 0.000000e+00 : f32
    %283 = vector.broadcast %cst_107 : f32 to vector<32x128xf32>
    %284 = arith.maximumf %282, %283 : vector<32x128xf32>
    %cst_108 = arith.constant 1.000000e+01 : f32
    %285 = vector.broadcast %cst_108 : f32 to vector<32x128xf32>
    %286 = arith.subf %221, %285 : vector<32x128xf32>
    %287 = math.absf %286 : vector<32x128xf32>
    %cst_109 = arith.constant 1.000000e+00 : f32
    %288 = vector.broadcast %cst_109 : f32 to vector<32x128xf32>
    %289 = arith.subf %288, %287 : vector<32x128xf32>
    %cst_110 = arith.constant 0.000000e+00 : f32
    %290 = vector.broadcast %cst_110 : f32 to vector<32x128xf32>
    %291 = arith.maximumf %289, %290 : vector<32x128xf32>
    %cst_111 = arith.constant 5.000000e-01 : f32
    %292 = vector.broadcast %cst_111 : f32 to vector<32x128xf32>
    %293 = arith.mulf %221, %292 : vector<32x128xf32>
    %cst_112 = arith.constant 0.000000e+00 : f32
    %294 = vector.broadcast %cst_112 : f32 to vector<32x128xf32>
    %295 = arith.subf %293, %294 : vector<32x128xf32>
    %296 = arith.mulf %295, %228 : vector<32x128xf32>
    %cst_113 = arith.constant 1.500000e+00 : f32
    %297 = vector.broadcast %cst_113 : f32 to vector<32x128xf32>
    %298 = arith.subf %297, %293 : vector<32x128xf32>
    %299 = arith.mulf %298, %235 : vector<32x128xf32>
    %300 = arith.addf %296, %299 : vector<32x128xf32>
    %cst_114 = arith.constant 5.000000e-01 : f32
    %301 = vector.broadcast %cst_114 : f32 to vector<32x128xf32>
    %302 = arith.subf %293, %301 : vector<32x128xf32>
    %303 = arith.mulf %302, %235 : vector<32x128xf32>
    %cst_115 = arith.constant 2.000000e+00 : f32
    %304 = vector.broadcast %cst_115 : f32 to vector<32x128xf32>
    %305 = arith.subf %304, %293 : vector<32x128xf32>
    %306 = arith.mulf %305, %242 : vector<32x128xf32>
    %307 = arith.addf %303, %306 : vector<32x128xf32>
    %cst_116 = arith.constant 1.000000e+00 : f32
    %308 = vector.broadcast %cst_116 : f32 to vector<32x128xf32>
    %309 = arith.subf %293, %308 : vector<32x128xf32>
    %310 = arith.mulf %309, %242 : vector<32x128xf32>
    %cst_117 = arith.constant 2.500000e+00 : f32
    %311 = vector.broadcast %cst_117 : f32 to vector<32x128xf32>
    %312 = arith.subf %311, %293 : vector<32x128xf32>
    %313 = arith.mulf %312, %249 : vector<32x128xf32>
    %314 = arith.addf %310, %313 : vector<32x128xf32>
    %cst_118 = arith.constant 1.500000e+00 : f32
    %315 = vector.broadcast %cst_118 : f32 to vector<32x128xf32>
    %316 = arith.subf %293, %315 : vector<32x128xf32>
    %317 = arith.mulf %316, %249 : vector<32x128xf32>
    %cst_119 = arith.constant 3.000000e+00 : f32
    %318 = vector.broadcast %cst_119 : f32 to vector<32x128xf32>
    %319 = arith.subf %318, %293 : vector<32x128xf32>
    %320 = arith.mulf %319, %256 : vector<32x128xf32>
    %321 = arith.addf %317, %320 : vector<32x128xf32>
    %cst_120 = arith.constant 2.000000e+00 : f32
    %322 = vector.broadcast %cst_120 : f32 to vector<32x128xf32>
    %323 = arith.subf %293, %322 : vector<32x128xf32>
    %324 = arith.mulf %323, %256 : vector<32x128xf32>
    %cst_121 = arith.constant 3.500000e+00 : f32
    %325 = vector.broadcast %cst_121 : f32 to vector<32x128xf32>
    %326 = arith.subf %325, %293 : vector<32x128xf32>
    %327 = arith.mulf %326, %263 : vector<32x128xf32>
    %328 = arith.addf %324, %327 : vector<32x128xf32>
    %cst_122 = arith.constant 2.500000e+00 : f32
    %329 = vector.broadcast %cst_122 : f32 to vector<32x128xf32>
    %330 = arith.subf %293, %329 : vector<32x128xf32>
    %331 = arith.mulf %330, %263 : vector<32x128xf32>
    %cst_123 = arith.constant 4.000000e+00 : f32
    %332 = vector.broadcast %cst_123 : f32 to vector<32x128xf32>
    %333 = arith.subf %332, %293 : vector<32x128xf32>
    %334 = arith.mulf %333, %270 : vector<32x128xf32>
    %335 = arith.addf %331, %334 : vector<32x128xf32>
    %cst_124 = arith.constant 3.000000e+00 : f32
    %336 = vector.broadcast %cst_124 : f32 to vector<32x128xf32>
    %337 = arith.subf %293, %336 : vector<32x128xf32>
    %338 = arith.mulf %337, %270 : vector<32x128xf32>
    %cst_125 = arith.constant 4.500000e+00 : f32
    %339 = vector.broadcast %cst_125 : f32 to vector<32x128xf32>
    %340 = arith.subf %339, %293 : vector<32x128xf32>
    %341 = arith.mulf %340, %277 : vector<32x128xf32>
    %342 = arith.addf %338, %341 : vector<32x128xf32>
    %cst_126 = arith.constant 3.500000e+00 : f32
    %343 = vector.broadcast %cst_126 : f32 to vector<32x128xf32>
    %344 = arith.subf %293, %343 : vector<32x128xf32>
    %345 = arith.mulf %344, %277 : vector<32x128xf32>
    %cst_127 = arith.constant 5.000000e+00 : f32
    %346 = vector.broadcast %cst_127 : f32 to vector<32x128xf32>
    %347 = arith.subf %346, %293 : vector<32x128xf32>
    %348 = arith.mulf %347, %284 : vector<32x128xf32>
    %349 = arith.addf %345, %348 : vector<32x128xf32>
    %cst_128 = arith.constant 4.000000e+00 : f32
    %350 = vector.broadcast %cst_128 : f32 to vector<32x128xf32>
    %351 = arith.subf %293, %350 : vector<32x128xf32>
    %352 = arith.mulf %351, %284 : vector<32x128xf32>
    %cst_129 = arith.constant 5.500000e+00 : f32
    %353 = vector.broadcast %cst_129 : f32 to vector<32x128xf32>
    %354 = arith.subf %353, %293 : vector<32x128xf32>
    %355 = arith.mulf %354, %291 : vector<32x128xf32>
    %356 = arith.addf %352, %355 : vector<32x128xf32>
    %cst_130 = arith.constant 0.333333343 : f32
    %357 = vector.broadcast %cst_130 : f32 to vector<32x128xf32>
    %358 = arith.mulf %221, %357 : vector<32x128xf32>
    %cst_131 = arith.constant 0.000000e+00 : f32
    %359 = vector.broadcast %cst_131 : f32 to vector<32x128xf32>
    %360 = arith.subf %358, %359 : vector<32x128xf32>
    %361 = arith.mulf %360, %300 : vector<32x128xf32>
    %cst_132 = arith.constant 1.33333337 : f32
    %362 = vector.broadcast %cst_132 : f32 to vector<32x128xf32>
    %363 = arith.subf %362, %358 : vector<32x128xf32>
    %364 = arith.mulf %363, %307 : vector<32x128xf32>
    %365 = arith.addf %361, %364 : vector<32x128xf32>
    %cst_133 = arith.constant 0.333333343 : f32
    %366 = vector.broadcast %cst_133 : f32 to vector<32x128xf32>
    %367 = arith.subf %358, %366 : vector<32x128xf32>
    %368 = arith.mulf %367, %307 : vector<32x128xf32>
    %cst_134 = arith.constant 1.66666663 : f32
    %369 = vector.broadcast %cst_134 : f32 to vector<32x128xf32>
    %370 = arith.subf %369, %358 : vector<32x128xf32>
    %371 = arith.mulf %370, %314 : vector<32x128xf32>
    %372 = arith.addf %368, %371 : vector<32x128xf32>
    %cst_135 = arith.constant 0.666666686 : f32
    %373 = vector.broadcast %cst_135 : f32 to vector<32x128xf32>
    %374 = arith.subf %358, %373 : vector<32x128xf32>
    %375 = arith.mulf %374, %314 : vector<32x128xf32>
    %cst_136 = arith.constant 2.000000e+00 : f32
    %376 = vector.broadcast %cst_136 : f32 to vector<32x128xf32>
    %377 = arith.subf %376, %358 : vector<32x128xf32>
    %378 = arith.mulf %377, %321 : vector<32x128xf32>
    %379 = arith.addf %375, %378 : vector<32x128xf32>
    %cst_137 = arith.constant 1.000000e+00 : f32
    %380 = vector.broadcast %cst_137 : f32 to vector<32x128xf32>
    %381 = arith.subf %358, %380 : vector<32x128xf32>
    %382 = arith.mulf %381, %321 : vector<32x128xf32>
    %cst_138 = arith.constant 2.33333325 : f32
    %383 = vector.broadcast %cst_138 : f32 to vector<32x128xf32>
    %384 = arith.subf %383, %358 : vector<32x128xf32>
    %385 = arith.mulf %384, %328 : vector<32x128xf32>
    %386 = arith.addf %382, %385 : vector<32x128xf32>
    %cst_139 = arith.constant 1.33333337 : f32
    %387 = vector.broadcast %cst_139 : f32 to vector<32x128xf32>
    %388 = arith.subf %358, %387 : vector<32x128xf32>
    %389 = arith.mulf %388, %328 : vector<32x128xf32>
    %cst_140 = arith.constant 2.66666675 : f32
    %390 = vector.broadcast %cst_140 : f32 to vector<32x128xf32>
    %391 = arith.subf %390, %358 : vector<32x128xf32>
    %392 = arith.mulf %391, %335 : vector<32x128xf32>
    %393 = arith.addf %389, %392 : vector<32x128xf32>
    %cst_141 = arith.constant 1.66666663 : f32
    %394 = vector.broadcast %cst_141 : f32 to vector<32x128xf32>
    %395 = arith.subf %358, %394 : vector<32x128xf32>
    %396 = arith.mulf %395, %335 : vector<32x128xf32>
    %cst_142 = arith.constant 3.000000e+00 : f32
    %397 = vector.broadcast %cst_142 : f32 to vector<32x128xf32>
    %398 = arith.subf %397, %358 : vector<32x128xf32>
    %399 = arith.mulf %398, %342 : vector<32x128xf32>
    %400 = arith.addf %396, %399 : vector<32x128xf32>
    %cst_143 = arith.constant 2.000000e+00 : f32
    %401 = vector.broadcast %cst_143 : f32 to vector<32x128xf32>
    %402 = arith.subf %358, %401 : vector<32x128xf32>
    %403 = arith.mulf %402, %342 : vector<32x128xf32>
    %cst_144 = arith.constant 3.33333325 : f32
    %404 = vector.broadcast %cst_144 : f32 to vector<32x128xf32>
    %405 = arith.subf %404, %358 : vector<32x128xf32>
    %406 = arith.mulf %405, %349 : vector<32x128xf32>
    %407 = arith.addf %403, %406 : vector<32x128xf32>
    %cst_145 = arith.constant 2.33333325 : f32
    %408 = vector.broadcast %cst_145 : f32 to vector<32x128xf32>
    %409 = arith.subf %358, %408 : vector<32x128xf32>
    %410 = arith.mulf %409, %349 : vector<32x128xf32>
    %cst_146 = arith.constant 3.66666675 : f32
    %411 = vector.broadcast %cst_146 : f32 to vector<32x128xf32>
    %412 = arith.subf %411, %358 : vector<32x128xf32>
    %413 = arith.mulf %412, %356 : vector<32x128xf32>
    %414 = arith.addf %410, %413 : vector<32x128xf32>
    %415 = tpu.concatenate %217, %365, %372, %379, %386, %393, %400, %407, %414 in 0 : vector<32x128xf32>, vector<32x128xf32>, vector<32x128xf32>, vector<32x128xf32>, vector<32x128xf32>, vector<32x128xf32>, vector<32x128xf32>, vector<32x128xf32>, vector<32x128xf32> -> vector<288x128xf32>
    %cst_147 = arith.constant dense<0.000000e+00> : vector<16x128xf32>
    %416 = tpu.matmul %209, %415, %cst_147 {dimension_numbers = #tpu.dot_dimension_numbers<[1], [0], [0], [1], [0, 0, 1, 1], [], []>} : vector<16x288xf32>, vector<288x128xf32>, vector<16x128xf32> -> vector<16x128xf32>
    %c0_148 = arith.constant 0 : index
    %c0_149 = arith.constant 0 : index
    %417 = vector.load %arg4[%c0_148, %c0_149] : memref<16x128xf32, #tpu.memory_space<vmem>>, vector<16x128xf32>
    tpu.vector_store %arg4[%c0_148, %c0_149], %416 {strides = array<i32>} : memref<16x128xf32, #tpu.memory_space<vmem>>, vector<16x128xf32>,
    return
  }
  func.func @transform_0(%arg0: i32) -> (i32, i32) {
    %c0_i32 = arith.constant 0 : i32
    %c0_i32_0 = arith.constant 0 : i32
    return %c0_i32, %arg0 : i32, i32
  }
  func.func @transform_1(%arg0: i32) -> (i32, i32) {
    %c0_i32 = arith.constant 0 : i32
    %c0_i32_0 = arith.constant 0 : i32
    %c0_i32_1 = arith.constant 0 : i32
    return %c0_i32, %c0_i32_0 : i32, i32
  }
  func.func @transform_2(%arg0: i32) -> (i32, i32) {
    %c0_i32 = arith.constant 0 : i32
    %c0_i32_0 = arith.constant 0 : i32
    %c0_i32_1 = arith.constant 0 : i32
    return %c0_i32, %c0_i32_0 : i32, i32
  }
  func.func @transform_3(%arg0: i32) -> (i32, i32) {
    %c0_i32 = arith.constant 0 : i32
    %c0_i32_0 = arith.constant 0 : i32
    return %c0_i32, %arg0 : i32, i32
  }
}

</mosaic_0001>

<llo_original>
// kernel: tpu_custom_call.1
$region0: #{tpu_custom_call.1}
  #allocation0 [shape = 'u32[]', space=smem, size = 0x4, offset = 0x4, fixed_abs, tag = 'smem constant byte address 0x4 - core index']
  #allocation1 [shape = 'u32[72,128]{1,0:T(1,128)}', space=vmem, size = 0x9000, scoped, tag = 'internal scratch']
  %s0 = inlined_call_operand.hbm [shape: f32[8,128], index: 0, kind: input, shape index: {}]
  %s1 = inlined_call_operand.hbm [shape: f32[32,72], index: 1, kind: input, shape index: {}]
  %s2 = inlined_call_operand.hbm [shape: f32[16,288], index: 2, kind: input, shape index: {}]
  %s3 = inlined_call_operand.hbm [shape: f32[16,128], index: 3, kind: output, shape index: {}]
  %s4 = sld [smem:[#allocation0]]
  $region34: #{tpu_custom_call.1} parent=0
    _
  %s6 = ssub.s32 1, %s4
  %s7 = scalar_select 0, %s6, %s4
  $region1: #{tpu_custom_call.1} parent=0
    #allocation2 [shape = 'u8[4096]{0}', space=vmem, size = 0x1000, scoped, tag = 'input window, operand 0, single buffered']
    #allocation3 [shape = 's32[1]{0}', space=sflag, size = 0x4, scoped, tag = 'scoped memory for tpu_custom_call.1']
    #allocation4 [shape = 's32[1]{0}', space=sflag, size = 0x4, scoped, tag = 'scoped memory for tpu_custom_call.1']
    #allocation5 [shape = 'u8[16384]{0}', space=vmem, size = 0x4000, scoped, tag = 'input window, operand 1, single buffered']
    #allocation6 [shape = 's32[1]{0}', space=sflag, size = 0x4, scoped, tag = 'scoped memory for tpu_custom_call.1']
    #allocation7 [shape = 'u8[24576]{0}', space=vmem, size = 0x6000, scoped, tag = 'input window, operand 2, single buffered']
    #allocation8 [shape = 'u8[8192]{0}', space=vmem, size = 0x2000, scoped, tag = 'output window, operand 0, single buffered']
    %8 = vsyncpa [#allocation3], 0
    %9 = vsyncpa [#allocation6], 0
    %10 = vsyncpa [#allocation4], 0
    // Predicated region
    $region2: #{tpu_custom_call.1} parent=1 // pred_check
      _
    $region3: #{tpu_custom_call.1} parent=1 // pred_check_branch
      %12 = sbr.rel (0) target = $region5
    $region4: #{tpu_custom_call.1} parent=1 // pred_region
      %14 = vsyncadd [#allocation3], 0
      %s16 = sshll.u32 %s0, 4
      %s17 = int_to_ptr.hbm [resolvable:$true] %s16
      %s18 = sshll.u32 [#allocation2], 4
      %s19 = int_to_ptr.vmem [resolvable:$true] %s18
      %21 = dma.hbm_to_vmem [thread:$0]  %s17, 128, %s19, [#allocation3]
    $region5: #{tpu_custom_call.1} parent=1 // pred_fallthru
      _
    // Predicated region
    $region6: #{tpu_custom_call.1} parent=1 // pred_check
      _
    $region7: #{tpu_custom_call.1} parent=1 // pred_check_branch
      %23 = sbr.rel (0) target = $region9
    $region8: #{tpu_custom_call.1} parent=1 // pred_region
      %25 = vsyncadd [#allocation6], 0
      %s26 = sshll.u32 %s1, 4
      %s27 = int_to_ptr.hbm [resolvable:$true] %s26
      %s28 = sshll.u32 [#allocation5], 4
      %s29 = int_to_ptr.vmem [resolvable:$true] %s28
      %34 = dma.hbm_to_vmem [thread:$0]  %s27, 512, %s29, [#allocation6], 128, 128, 8
    $region9: #{tpu_custom_call.1} parent=1 // pred_fallthru
      _
    // Predicated region
    $region10: #{tpu_custom_call.1} parent=1 // pred_check
      _
    $region11: #{tpu_custom_call.1} parent=1 // pred_check_branch
      %36 = sbr.rel (0) target = $region13
    $region12: #{tpu_custom_call.1} parent=1 // pred_region
      %38 = vsyncadd [#allocation6], 0
      %s39 = sshll.u32 %s2, 4
      %s40 = int_to_ptr.hbm [resolvable:$true] %s39
      %s41 = sshll.u32 [#allocation7], 4
      %s42 = int_to_ptr.vmem [resolvable:$true] %s41
      %47 = dma.hbm_to_vmem [thread:$0]  %s40, 768, %s42, [#allocation6], 384, 384, 24
    $region13: #{tpu_custom_call.1} parent=1 // pred_fallthru
      _
    // Predicated region
    $region14: #{tpu_custom_call.1} parent=1 // pred_check
      _
    $region15: #{tpu_custom_call.1} parent=1 // pred_check_branch
      %49 = sbr.rel (0) target = $region17
    $region16: #{tpu_custom_call.1} parent=1 // pred_region
      %51 = dma.done [#allocation3], 128
    $region17: #{tpu_custom_call.1} parent=1 // pred_fallthru
      _
    // Predicated region
    $region18: #{tpu_custom_call.1} parent=1 // pred_check
      _
    $region19: #{tpu_custom_call.1} parent=1 // pred_check_branch
      %53 = sbr.rel (0) target = $region21
    $region20: #{tpu_custom_call.1} parent=1 // pred_region
      %55 = dma.done [#allocation6], 512
    $region21: #{tpu_custom_call.1} parent=1 // pred_fallthru
      _
    // Predicated region
    $region22: #{tpu_custom_call.1} parent=1 // pred_check
      _
    $region23: #{tpu_custom_call.1} parent=1 // pred_check_branch
      %57 = sbr.rel (0) target = $region25
    $region24: #{tpu_custom_call.1} parent=1 // pred_region
      %59 = dma.done [#allocation6], 768
    $region25: #{tpu_custom_call.1} parent=1 // pred_fallthru
      _
    %v60 = vld [vmem:[#allocation2] sm:$0xff]
    %v61 = vld [vmem:[#allocation5] sm:$0xff]
    %v62 = vld [vmem:[#allocation5 + $0x8] sm:$0xff]
    %v63 = vld [vmem:[#allocation5 + $0x10] sm:$0xff]
    %v64 = vld [vmem:[#allocation5 + $0x18] sm:$0xff]
    %v65 = vmul.f32 %v60, 0.5
    %v66 = vtanh.pop %v65
    %v67 = vmul.f32 %v66, 0.5
    %v68 = vadd.f32 %v67, 0.5
    %v69 = vmul.f32 %v60, %v68
    %v70 = vsub.f32 %v60, -2.2
    %v71 = vmul.f32 %v70, 2.5
    %v72 = vsub.f32 %v71, 1.0
    %v73 = vand.u32 2147483647, %v72
    %v74 = vsub.f32 1.0, %v73
    %v75 = vmax.f32 %v74, 0.0
    %v76 = vsub.f32 %v71, 2.0
    %v77 = vand.u32 2147483647, %v76
    %v78 = vsub.f32 1.0, %v77
    %v79 = vmax.f32 %v78, 0.0
    %v80 = vsub.f32 %v71, 3.0
    %v81 = vand.u32 2147483647, %v80
    %v82 = vsub.f32 1.0, %v81
    %v83 = vmax.f32 %v82, 0.0
    %v84 = vsub.f32 %v71, 4.0
    %v85 = vand.u32 2147483647, %v84
    %v86 = vsub.f32 1.0, %v85
    %v87 = vmax.f32 %v86, 0.0
    %v88 = vsub.f32 %v71, 5.0
    %v89 = vand.u32 2147483647, %v88
    %v90 = vsub.f32 1.0, %v89
    %v91 = vmax.f32 %v90, 0.0
    %v92 = vsub.f32 %v71, 6.0
    %v93 = vand.u32 2147483647, %v92
    %v94 = vsub.f32 1.0, %v93
    %v95 = vmax.f32 %v94, 0.0
    %v96 = vsub.f32 %v71, 7.0
    %v97 = vand.u32 2147483647, %v96
    %v98 = vsub.f32 1.0, %v97
    %v99 = vmax.f32 %v98, 0.0
    %v100 = vsub.f32 %v71, 8.0
    %v101 = vand.u32 2147483647, %v100
    %v102 = vsub.f32 1.0, %v101
    %v103 = vmax.f32 %v102, 0.0
    %v104 = vsub.f32 %v71, 9.0
    %v105 = vand.u32 2147483647, %v104
    %v106 = vsub.f32 1.0, %v105
    %v107 = vmax.f32 %v106, 0.0
    %v108 = vsub.f32 %v71, 10.0
    %v109 = vand.u32 2147483647, %v108
    %v110 = vsub.f32 1.0, %v109
    %v111 = vmax.f32 %v110, 0.0
    %v112 = vmul.f32 %v71, 0.5
    %v113 = vmul.f32 %v112, %v75
    %v114 = vsub.f32 1.5, %v112
    %v115 = vmul.f32 %v114, %v79
    %v116 = vadd.f32 %v113, %v115
    %v117 = vsub.f32 %v112, 0.5
    %v118 = vmul.f32 %v117, %v79
    %v119 = vsub.f32 2.0, %v112
    %v120 = vmul.f32 %v119, %v83
    %v121 = vadd.f32 %v118, %v120
    %v122 = vsub.f32 %v112, 1.0
    %v123 = vmul.f32 %v122, %v83
    %v124 = vsub.f32 2.5, %v112
    %v125 = vmul.f32 %v124, %v87
    %v126 = vadd.f32 %v123, %v125
    %v127 = vsub.f32 %v112, 1.5
    %v128 = vmul.f32 %v127, %v87
    %v129 = vsub.f32 3.0, %v112
    %v130 = vmul.f32 %v129, %v91
    %v131 = vadd.f32 %v128, %v130
    %v132 = vsub.f32 %v112, 2.0
    %v133 = vmul.f32 %v132, %v91
    %v134 = vsub.f32 3.5, %v112
    %v135 = vmul.f32 %v134, %v95
    %v136 = vadd.f32 %v133, %v135
    %v137 = vsub.f32 %v112, 2.5
    %v138 = vmul.f32 %v137, %v95
    %v139 = vsub.f32 4.0, %v112
    %v140 = vmul.f32 %v139, %v99
    %v141 = vadd.f32 %v138, %v140
    %v142 = vsub.f32 %v112, 3.0
    %v143 = vmul.f32 %v142, %v99
    %v144 = vsub.f32 4.5, %v112
    %v145 = vmul.f32 %v144, %v103
    %v146 = vadd.f32 %v143, %v145
    %v147 = vsub.f32 %v112, 3.5
    %v148 = vmul.f32 %v147, %v103
    %v149 = vsub.f32 5.0, %v112
    %v150 = vmul.f32 %v149, %v107
    %v151 = vadd.f32 %v148, %v150
    %v152 = vsub.f32 %v112, 4.0
    %v153 = vmul.f32 %v152, %v107
    %v154 = vsub.f32 5.5, %v112
    %v155 = vmul.f32 %v154, %v111
    %v156 = vadd.f32 %v153, %v155
    %v157 = vmul.f32 %v71, 0.33333334
    %v158 = vmul.f32 %v157, %v116
    %v159 = vsub.f32 1.3333334, %v157
    %v160 = vmul.f32 %v159, %v121
    %v161 = vadd.f32 %v158, %v160
    %v162 = vsub.f32 %v157, 0.33333334
    %v163 = vmul.f32 %v162, %v121
    %v164 = vsub.f32 1.6666666, %v157
    %v165 = vmul.f32 %v164, %v126
    %v166 = vadd.f32 %v163, %v165
    %v167 = vsub.f32 %v157, 0.6666667
    %v168 = vmul.f32 %v167, %v126
    %v169 = vsub.f32 2.0, %v157
    %v170 = vmul.f32 %v169, %v131
    %v171 = vadd.f32 %v168, %v170
    %v172 = vsub.f32 %v157, 1.0
    %v173 = vmul.f32 %v172, %v131
    %v174 = vsub.f32 2.3333333, %v157
    %v175 = vmul.f32 %v174, %v136
    %v176 = vadd.f32 %v173, %v175
    %v177 = vsub.f32 %v157, 1.3333334
    %v178 = vmul.f32 %v177, %v136
    %v179 = vsub.f32 2.6666667, %v157
    %v180 = vmul.f32 %v179, %v141
    %v181 = vadd.f32 %v178, %v180
    %v182 = vsub.f32 %v157, 1.6666666
    %v183 = vmul.f32 %v182, %v141
    %v184 = vsub.f32 3.0, %v157
    %v185 = vmul.f32 %v184, %v146
    %v186 = vadd.f32 %v183, %v185
    %v187 = vsub.f32 %v157, 2.0
    %v188 = vmul.f32 %v187, %v146
    %v189 = vsub.f32 3.3333333, %v157
    %v190 = vmul.f32 %v189, %v151
    %v191 = vadd.f32 %v188, %v190
    %v192 = vsub.f32 %v157, 2.3333333
    %v193 = vmul.f32 %v192, %v151
    %v194 = vsub.f32 3.6666667, %v157
    %v195 = vmul.f32 %v194, %v156
    %v196 = vadd.f32 %v193, %v195
    %vm197 = vcmask 588800
    %v199 = vsel %vm197, %v61, 0
    %v202 = vsel %vm197, %v62, 0
    %v205 = vsel %vm197, %v63, 0
    %v208 = vsel %vm197, %v64, 0
    %210 = vmatpush.msra.mxu0 0.0
    %211 = vmatpush.msra.mxu0 0.0
    %212 = vmatpush.msra.mxu0 0.0
    %213 = vmatpush.msra.mxu0 0.0
    %214 = vmatpush.msra.mxu0 0.0
    %215 = vmatpush.msra.mxu0 0.0
    %216 = vmatpush.msra.mxu0 0.0
    %217 = vmatpush.msra.mxu0 %v196
    %218 = vmatpush.msra.mxu0 %v191
    %219 = vmatpush.msra.mxu0 %v186
    %220 = vmatpush.msra.mxu0 %v181
    %221 = vmatpush.msra.mxu0 %v176
    %222 = vmatpush.msra.mxu0 %v171
    %223 = vmatpush.msra.mxu0 %v166
    %224 = vmatpush.msra.mxu0 %v161
    %225 = vmatpush.msra.mxu0 %v69
    %226 = vmatmul.f32.gmra.mxu0 %v199
    %v227 = vpop.f32.mrf.mxu0
    %v228 = vadd.f32 0.0, %v227
    %229 = vmatmul.f32.gmra.mxu0 %v202
    %v230 = vpop.f32.mrf.mxu0
    %v231 = vadd.f32 0.0, %v230
    %232 = vmatmul.f32.gmra.mxu0 %v205
    %v233 = vpop.f32.mrf.mxu0
    %v234 = vadd.f32 0.0, %v233
    %235 = vmatmul.f32.gmra.mxu0 %v208
    %v236 = vpop.f32.mrf.mxu0
    %v237 = vadd.f32 0.0, %v236
    %238 = vdwg.mxu0
    %v239 = vld [vmem:[#allocation7] sm:$0xff]
    %v240 = vld [vmem:[#allocation7 + $0x8] sm:$0xff]
    %v241 = vld [vmem:[#allocation7 + $0x10] sm:$0xff]
    %v242 = vld [vmem:[#allocation7 + $0x18] sm:$0xff]
    %v243 = vld [vmem:[#allocation7 + $0x20] sm:$0xff]
    %v244 = vld [vmem:[#allocation7 + $0x28] sm:$0xff]
    %v245 = vmul.f32 %v228, 0.5
    %v246 = vmul.f32 %v231, 0.5
    %v247 = vmul.f32 %v234, 0.5
    %v248 = vmul.f32 %v237, 0.5
    %v249 = vtanh.pop %v245
    %v250 = vtanh.pop %v246
    %v251 = vtanh.pop %v247
    %v252 = vtanh.pop %v248
    %v253 = vmul.f32 %v249, 0.5
    %v254 = vmul.f32 %v250, 0.5
    %v255 = vmul.f32 %v251, 0.5
    %v256 = vmul.f32 %v252, 0.5
    %v257 = vadd.f32 %v253, 0.5
    %v258 = vadd.f32 %v254, 0.5
    %v259 = vadd.f32 %v255, 0.5
    %v260 = vadd.f32 %v256, 0.5
    %v261 = vmul.f32 %v228, %v257
    %v262 = vmul.f32 %v231, %v258
    %v263 = vmul.f32 %v234, %v259
    %v264 = vmul.f32 %v237, %v260
    %v265 = vsub.f32 %v228, -2.2
    %v266 = vsub.f32 %v231, -2.2
    %v267 = vsub.f32 %v234, -2.2
    %v268 = vsub.f32 %v237, -2.2
    %v269 = vmul.f32 %v265, 2.5
    %v270 = vmul.f32 %v266, 2.5
    %v271 = vmul.f32 %v267, 2.5
    %v272 = vmul.f32 %v268, 2.5
    %v273 = vsub.f32 %v269, 1.0
    %v274 = vsub.f32 %v270, 1.0
    %v275 = vsub.f32 %v271, 1.0
    %v276 = vsub.f32 %v272, 1.0
    %v277 = vand.u32 2147483647, %v273
    %v278 = vand.u32 2147483647, %v274
    %v279 = vand.u32 2147483647, %v275
    %v280 = vand.u32 2147483647, %v276
    %v281 = vsub.f32 1.0, %v277
    %v282 = vsub.f32 1.0, %v278
    %v283 = vsub.f32 1.0, %v279
    %v284 = vsub.f32 1.0, %v280
    %v285 = vmax.f32 %v281, 0.0
    %v286 = vmax.f32 %v282, 0.0
    %v287 = vmax.f32 %v283, 0.0
    %v288 = vmax.f32 %v284, 0.0
    %v289 = vsub.f32 %v269, 2.0
    %v290 = vsub.f32 %v270, 2.0
    %v291 = vsub.f32 %v271, 2.0
    %v292 = vsub.f32 %v272, 2.0
    %v293 = vand.u32 2147483647, %v289
    %v294 = vand.u32 2147483647, %v290
    %v295 = vand.u32 2147483647, %v291
    %v296 = vand.u32 2147483647, %v292
    %v297 = vsub.f32 1.0, %v293
    %v298 = vsub.f32 1.0, %v294
    %v299 = vsub.f32 1.0, %v295
    %v300 = vsub.f32 1.0, %v296
    %v301 = vmax.f32 %v297, 0.0
    %v302 = vmax.f32 %v298, 0.0
    %v303 = vmax.f32 %v299, 0.0
    %v304 = vmax.f32 %v300, 0.0
    %v305 = vsub.f32 %v269, 3.0
    %v306 = vsub.f32 %v270, 3.0
    %v307 = vsub.f32 %v271, 3.0
    %v308 = vsub.f32 %v272, 3.0
    %v309 = vand.u32 2147483647, %v305
    %v310 = vand.u32 2147483647, %v306
    %v311 = vand.u32 2147483647, %v307
    %v312 = vand.u32 2147483647, %v308
    %v313 = vsub.f32 1.0, %v309
    %v314 = vsub.f32 1.0, %v310
    %v315 = vsub.f32 1.0, %v311
    %v316 = vsub.f32 1.0, %v312
    %v317 = vmax.f32 %v313, 0.0
    %v318 = vmax.f32 %v314, 0.0
    %v319 = vmax.f32 %v315, 0.0
    %v320 = vmax.f32 %v316, 0.0
    %v321 = vsub.f32 %v269, 4.0
    %v322 = vsub.f32 %v270, 4.0
    %v323 = vsub.f32 %v271, 4.0
    %v324 = vsub.f32 %v272, 4.0
    %v325 = vand.u32 2147483647, %v321
    %v326 = vand.u32 2147483647, %v322
    %v327 = vand.u32 2147483647, %v323
    %v328 = vand.u32 2147483647, %v324
    %v329 = vsub.f32 1.0, %v325
    %v330 = vsub.f32 1.0, %v326
    %v331 = vsub.f32 1.0, %v327
    %v332 = vsub.f32 1.0, %v328
    %v333 = vmax.f32 %v329, 0.0
    %v334 = vmax.f32 %v330, 0.0
    %v335 = vmax.f32 %v331, 0.0
    %v336 = vmax.f32 %v332, 0.0
    %v337 = vsub.f32 %v269, 5.0
    %v338 = vsub.f32 %v270, 5.0
    %v339 = vsub.f32 %v271, 5.0
    %v340 = vsub.f32 %v272, 5.0
    %v341 = vand.u32 2147483647, %v337
    %v342 = vand.u32 2147483647, %v338
    %v343 = vand.u32 2147483647, %v339
    %v344 = vand.u32 2147483647, %v340
    %v345 = vsub.f32 1.0, %v341
    %v346 = vsub.f32 1.0, %v342
    %v347 = vsub.f32 1.0, %v343
    %v348 = vsub.f32 1.0, %v344
    %v349 = vmax.f32 %v345, 0.0
    %v350 = vmax.f32 %v346, 0.0
    %v351 = vmax.f32 %v347, 0.0
    %v352 = vmax.f32 %v348, 0.0
    %v353 = vsub.f32 %v269, 6.0
    %v354 = vsub.f32 %v270, 6.0
    %v355 = vsub.f32 %v271, 6.0
    %v356 = vsub.f32 %v272, 6.0
    %v357 = vand.u32 2147483647, %v353
    %v358 = vand.u32 2147483647, %v354
    %v359 = vand.u32 2147483647, %v355
    %v360 = vand.u32 2147483647, %v356
    %v361 = vsub.f32 1.0, %v357
    %v362 = vsub.f32 1.0, %v358
    %v363 = vsub.f32 1.0, %v359
    %v364 = vsub.f32 1.0, %v360
    %v365 = vmax.f32 %v361, 0.0
    %v366 = vmax.f32 %v362, 0.0
    %v367 = vmax.f32 %v363, 0.0
    %v368 = vmax.f32 %v364, 0.0
    %v369 = vsub.f32 %v269, 7.0
    %v370 = vsub.f32 %v270, 7.0
    %v371 = vsub.f32 %v271, 7.0
    %v372 = vsub.f32 %v272, 7.0
    %v373 = vand.u32 2147483647, %v369
    %v374 = vand.u32 2147483647, %v370
    %v375 = vand.u32 2147483647, %v371
    %v376 = vand.u32 2147483647, %v372
    %v377 = vsub.f32 1.0, %v373
    %v378 = vsub.f32 1.0, %v374
    %v379 = vsub.f32 1.0, %v375
    %v380 = vsub.f32 1.0, %v376
    %v381 = vmax.f32 %v377, 0.0
    %v382 = vmax.f32 %v378, 0.0
    %v383 = vmax.f32 %v379, 0.0
    %v384 = vmax.f32 %v380, 0.0
    %v385 = vsub.f32 %v269, 8.0
    %v386 = vsub.f32 %v270, 8.0
    %v387 = vsub.f32 %v271, 8.0
    %v388 = vsub.f32 %v272, 8.0
    %v389 = vand.u32 2147483647, %v385
    %v390 = vand.u32 2147483647, %v386
    %v391 = vand.u32 2147483647, %v387
    %v392 = vand.u32 2147483647, %v388
    %v393 = vsub.f32 1.0, %v389
    %v394 = vsub.f32 1.0, %v390
    %v395 = vsub.f32 1.0, %v391
    %v396 = vsub.f32 1.0, %v392
    %v397 = vmax.f32 %v393, 0.0
    %v398 = vmax.f32 %v394, 0.0
    %v399 = vmax.f32 %v395, 0.0
    %v400 = vmax.f32 %v396, 0.0
    %v401 = vsub.f32 %v269, 9.0
    %v402 = vsub.f32 %v270, 9.0
    %v403 = vsub.f32 %v271, 9.0
    %v404 = vsub.f32 %v272, 9.0
    %v405 = vand.u32 2147483647, %v401
    %v406 = vand.u32 2147483647, %v402
    %v407 = vand.u32 2147483647, %v403
    %v408 = vand.u32 2147483647, %v404
    %v409 = vsub.f32 1.0, %v405
    %v410 = vsub.f32 1.0, %v406
    %v411 = vsub.f32 1.0, %v407
    %v412 = vsub.f32 1.0, %v408
    %v413 = vmax.f32 %v409, 0.0
    %v414 = vmax.f32 %v410, 0.0
    %v415 = vmax.f32 %v411, 0.0
    %v416 = vmax.f32 %v412, 0.0
    %v417 = vsub.f32 %v269, 10.0
    %v418 = vsub.f32 %v270, 10.0
    %v419 = vsub.f32 %v271, 10.0
    %v420 = vsub.f32 %v272, 10.0
    %v421 = vand.u32 2147483647, %v417
    %v422 = vand.u32 2147483647, %v418
    %v423 = vand.u32 2147483647, %v419
    %v424 = vand.u32 2147483647, %v420
    %v425 = vsub.f32 1.0, %v421
    %v426 = vsub.f32 1.0, %v422
    %v427 = vsub.f32 1.0, %v423
    %v428 = vsub.f32 1.0, %v424
    %v429 = vmax.f32 %v425, 0.0
    %v430 = vmax.f32 %v426, 0.0
    %v431 = vmax.f32 %v427, 0.0
    %v432 = vmax.f32 %v428, 0.0
    %v433 = vmul.f32 %v269, 0.5
    %v434 = vmul.f32 %v270, 0.5
    %v435 = vmul.f32 %v271, 0.5
    %v436 = vmul.f32 %v272, 0.5
    %v437 = vmul.f32 %v433, %v285
    %v438 = vmul.f32 %v434, %v286
    %v439 = vmul.f32 %v435, %v287
    %v440 = vmul.f32 %v436, %v288
    %v441 = vsub.f32 1.5, %v433
    %v442 = vsub.f32 1.5, %v434
    %v443 = vsub.f32 1.5, %v435
    %v444 = vsub.f32 1.5, %v436
    %v445 = vmul.f32 %v441, %v301
    %v446 = vmul.f32 %v442, %v302
    %v447 = vmul.f32 %v443, %v303
    %v448 = vmul.f32 %v444, %v304
    %v449 = vadd.f32 %v437, %v445
    %v450 = vadd.f32 %v438, %v446
    %v451 = vadd.f32 %v439, %v447
    %v452 = vadd.f32 %v440, %v448
    %v453 = vsub.f32 %v433, 0.5
    %v454 = vsub.f32 %v434, 0.5
    %v455 = vsub.f32 %v435, 0.5
    %v456 = vsub.f32 %v436, 0.5
    %v457 = vmul.f32 %v453, %v301
    %v458 = vmul.f32 %v454, %v302
    %v459 = vmul.f32 %v455, %v303
    %v460 = vmul.f32 %v456, %v304
    %v461 = vsub.f32 2.0, %v433
    %v462 = vsub.f32 2.0, %v434
    %v463 = vsub.f32 2.0, %v435
    %v464 = vsub.f32 2.0, %v436
    %v465 = vmul.f32 %v461, %v317
    %v466 = vmul.f32 %v462, %v318
    %v467 = vmul.f32 %v463, %v319
    %v468 = vmul.f32 %v464, %v320
    %v469 = vadd.f32 %v457, %v465
    %v470 = vadd.f32 %v458, %v466
    %v471 = vadd.f32 %v459, %v467
    %v472 = vadd.f32 %v460, %v468
    %v473 = vsub.f32 %v433, 1.0
    %v474 = vsub.f32 %v434, 1.0
    %v475 = vsub.f32 %v435, 1.0
    %v476 = vsub.f32 %v436, 1.0
    %v477 = vmul.f32 %v473, %v317
    %v478 = vmul.f32 %v474, %v318
    %v479 = vmul.f32 %v475, %v319
    %v480 = vmul.f32 %v476, %v320
    %v481 = vsub.f32 2.5, %v433
    %v482 = vsub.f32 2.5, %v434
    %v483 = vsub.f32 2.5, %v435
    %v484 = vsub.f32 2.5, %v436
    %v485 = vmul.f32 %v481, %v333
    %v486 = vmul.f32 %v482, %v334
    %v487 = vmul.f32 %v483, %v335
    %v488 = vmul.f32 %v484, %v336
    %v489 = vadd.f32 %v477, %v485
    %v490 = vadd.f32 %v478, %v486
    %v491 = vadd.f32 %v479, %v487
    %v492 = vadd.f32 %v480, %v488
    %v493 = vsub.f32 %v433, 1.5
    %v494 = vsub.f32 %v434, 1.5
    %v495 = vsub.f32 %v435, 1.5
    %v496 = vsub.f32 %v436, 1.5
    %v497 = vmul.f32 %v493, %v333
    %v498 = vmul.f32 %v494, %v334
    %v499 = vmul.f32 %v495, %v335
    %v500 = vmul.f32 %v496, %v336
    %v501 = vsub.f32 3.0, %v433
    %v502 = vsub.f32 3.0, %v434
    %v503 = vsub.f32 3.0, %v435
    %v504 = vsub.f32 3.0, %v436
    %v505 = vmul.f32 %v501, %v349
    %v506 = vmul.f32 %v502, %v350
    %v507 = vmul.f32 %v503, %v351
    %v508 = vmul.f32 %v504, %v352
    %v509 = vadd.f32 %v497, %v505
    %v510 = vadd.f32 %v498, %v506
    %v511 = vadd.f32 %v499, %v507
    %v512 = vadd.f32 %v500, %v508
    %v513 = vsub.f32 %v433, 2.0
    %v514 = vsub.f32 %v434, 2.0
    %v515 = vsub.f32 %v435, 2.0
    %v516 = vsub.f32 %v436, 2.0
    %v517 = vmul.f32 %v513, %v349
    %v518 = vmul.f32 %v514, %v350
    %v519 = vmul.f32 %v515, %v351
    %v520 = vmul.f32 %v516, %v352
    %v521 = vsub.f32 3.5, %v433
    %v522 = vsub.f32 3.5, %v434
    %v523 = vsub.f32 3.5, %v435
    %v524 = vsub.f32 3.5, %v436
    %v525 = vmul.f32 %v521, %v365
    %v526 = vmul.f32 %v522, %v366
    %v527 = vmul.f32 %v523, %v367
    %v528 = vmul.f32 %v524, %v368
    %v529 = vadd.f32 %v517, %v525
    %v530 = vadd.f32 %v518, %v526
    %v531 = vadd.f32 %v519, %v527
    %v532 = vadd.f32 %v520, %v528
    %v533 = vsub.f32 %v433, 2.5
    %v534 = vsub.f32 %v434, 2.5
    %v535 = vsub.f32 %v435, 2.5
    %v536 = vsub.f32 %v436, 2.5
    %v537 = vmul.f32 %v533, %v365
    %v538 = vmul.f32 %v534, %v366
    %v539 = vmul.f32 %v535, %v367
    %v540 = vmul.f32 %v536, %v368
    %v541 = vsub.f32 4.0, %v433
    %v542 = vsub.f32 4.0, %v434
    %v543 = vsub.f32 4.0, %v435
    %v544 = vsub.f32 4.0, %v436
    %v545 = vmul.f32 %v541, %v381
    %v546 = vmul.f32 %v542, %v382
    %v547 = vmul.f32 %v543, %v383
    %v548 = vmul.f32 %v544, %v384
    %v549 = vadd.f32 %v537, %v545
    %v550 = vadd.f32 %v538, %v546
    %v551 = vadd.f32 %v539, %v547
    %v552 = vadd.f32 %v540, %v548
    %v553 = vsub.f32 %v433, 3.0
    %v554 = vsub.f32 %v434, 3.0
    %v555 = vsub.f32 %v435, 3.0
    %v556 = vsub.f32 %v436, 3.0
    %v557 = vmul.f32 %v553, %v381
    %v558 = vmul.f32 %v554, %v382
    %v559 = vmul.f32 %v555, %v383
    %v560 = vmul.f32 %v556, %v384
    %v561 = vsub.f32 4.5, %v433
    %v562 = vsub.f32 4.5, %v434
    %v563 = vsub.f32 4.5, %v435
    %v564 = vsub.f32 4.5, %v436
    %v565 = vmul.f32 %v561, %v397
    %v566 = vmul.f32 %v562, %v398
    %v567 = vmul.f32 %v563, %v399
    %v568 = vmul.f32 %v564, %v400
    %v569 = vadd.f32 %v557, %v565
    %v570 = vadd.f32 %v558, %v566
    %v571 = vadd.f32 %v559, %v567
    %v572 = vadd.f32 %v560, %v568
    %v573 = vsub.f32 %v433, 3.5
    %v574 = vsub.f32 %v434, 3.5
    %v575 = vsub.f32 %v435, 3.5
    %v576 = vsub.f32 %v436, 3.5
    %v577 = vmul.f32 %v573, %v397
    %v578 = vmul.f32 %v574, %v398
    %v579 = vmul.f32 %v575, %v399
    %v580 = vmul.f32 %v576, %v400
    %v581 = vsub.f32 5.0, %v433
    %v582 = vsub.f32 5.0, %v434
    %v583 = vsub.f32 5.0, %v435
    %v584 = vsub.f32 5.0, %v436
    %v585 = vmul.f32 %v581, %v413
    %v586 = vmul.f32 %v582, %v414
    %v587 = vmul.f32 %v583, %v415
    %v588 = vmul.f32 %v584, %v416
    %v589 = vadd.f32 %v577, %v585
    %v590 = vadd.f32 %v578, %v586
    %v591 = vadd.f32 %v579, %v587
    %v592 = vadd.f32 %v580, %v588
    %v593 = vsub.f32 %v433, 4.0
    %v594 = vsub.f32 %v434, 4.0
    %v595 = vsub.f32 %v435, 4.0
    %v596 = vsub.f32 %v436, 4.0
    %v597 = vmul.f32 %v593, %v413
    %v598 = vmul.f32 %v594, %v414
    %v599 = vmul.f32 %v595, %v415
    %v600 = vmul.f32 %v596, %v416
    %v601 = vsub.f32 5.5, %v433
    %v602 = vsub.f32 5.5, %v434
    %v603 = vsub.f32 5.5, %v435
    %v604 = vsub.f32 5.5, %v436
    %v605 = vmul.f32 %v601, %v429
    %v606 = vmul.f32 %v602, %v430
    %v607 = vmul.f32 %v603, %v431
    %v608 = vmul.f32 %v604, %v432
    %v609 = vadd.f32 %v597, %v605
    %v610 = vadd.f32 %v598, %v606
    %v611 = vadd.f32 %v599, %v607
    %v612 = vadd.f32 %v600, %v608
    %v613 = vmul.f32 %v269, 0.33333334
    %v614 = vmul.f32 %v270, 0.33333334
    %v615 = vmul.f32 %v271, 0.33333334
    %v616 = vmul.f32 %v272, 0.33333334
    %v617 = vmul.f32 %v613, %v449
    %v618 = vmul.f32 %v614, %v450
    %v619 = vmul.f32 %v615, %v451
    %v620 = vmul.f32 %v616, %v452
    %v621 = vsub.f32 1.3333334, %v613
    %v622 = vsub.f32 1.3333334, %v614
    %v623 = vsub.f32 1.3333334, %v615
    %v624 = vsub.f32 1.3333334, %v616
    %v625 = vmul.f32 %v621, %v469
    %v626 = vmul.f32 %v622, %v470
    %v627 = vmul.f32 %v623, %v471
    %v628 = vmul.f32 %v624, %v472
    %v629 = vadd.f32 %v617, %v625
    %v630 = vadd.f32 %v618, %v626
    %v631 = vadd.f32 %v619, %v627
    %v632 = vadd.f32 %v620, %v628
    %v633 = vsub.f32 %v613, 0.33333334
    %v634 = vsub.f32 %v614, 0.33333334
    %v635 = vsub.f32 %v615, 0.33333334
    %v636 = vsub.f32 %v616, 0.33333334
    %v637 = vmul.f32 %v633, %v469
    %v638 = vmul.f32 %v634, %v470
    %v639 = vmul.f32 %v635, %v471
    %v640 = vmul.f32 %v636, %v472
    %v641 = vsub.f32 1.6666666, %v613
    %v642 = vsub.f32 1.6666666, %v614
    %v643 = vsub.f32 1.6666666, %v615
    %v644 = vsub.f32 1.6666666, %v616
    %v645 = vmul.f32 %v641, %v489
    %v646 = vmul.f32 %v642, %v490
    %v647 = vmul.f32 %v643, %v491
    %v648 = vmul.f32 %v644, %v492
    %v649 = vadd.f32 %v637, %v645
    %v650 = vadd.f32 %v638, %v646
    %v651 = vadd.f32 %v639, %v647
    %v652 = vadd.f32 %v640, %v648
    %v653 = vsub.f32 %v613, 0.6666667
    %v654 = vsub.f32 %v614, 0.6666667
    %v655 = vsub.f32 %v615, 0.6666667
    %v656 = vsub.f32 %v616, 0.6666667
    %v657 = vmul.f32 %v653, %v489
    %v658 = vmul.f32 %v654, %v490
    %v659 = vmul.f32 %v655, %v491
    %v660 = vmul.f32 %v656, %v492
    %v661 = vsub.f32 2.0, %v613
    %v662 = vsub.f32 2.0, %v614
    %v663 = vsub.f32 2.0, %v615
    %v664 = vsub.f32 2.0, %v616
    %v665 = vmul.f32 %v661, %v509
    %v666 = vmul.f32 %v662, %v510
    %v667 = vmul.f32 %v663, %v511
    %v668 = vmul.f32 %v664, %v512
    %v669 = vadd.f32 %v657, %v665
    %v670 = vadd.f32 %v658, %v666
    %v671 = vadd.f32 %v659, %v667
    %v672 = vadd.f32 %v660, %v668
    %v673 = vsub.f32 %v613, 1.0
    %v674 = vsub.f32 %v614, 1.0
    %v675 = vsub.f32 %v615, 1.0
    %v676 = vsub.f32 %v616, 1.0
    %v677 = vmul.f32 %v673, %v509
    %v678 = vmul.f32 %v674, %v510
    %v679 = vmul.f32 %v675, %v511
    %v680 = vmul.f32 %v676, %v512
    %v681 = vsub.f32 2.3333333, %v613
    %v682 = vsub.f32 2.3333333, %v614
    %v683 = vsub.f32 2.3333333, %v615
    %v684 = vsub.f32 2.3333333, %v616
    %v685 = vmul.f32 %v681, %v529
    %v686 = vmul.f32 %v682, %v530
    %v687 = vmul.f32 %v683, %v531
    %v688 = vmul.f32 %v684, %v532
    %v689 = vadd.f32 %v677, %v685
    %v690 = vadd.f32 %v678, %v686
    %v691 = vadd.f32 %v679, %v687
    %v692 = vadd.f32 %v680, %v688
    %v693 = vsub.f32 %v613, 1.3333334
    %v694 = vsub.f32 %v614, 1.3333334
    %v695 = vsub.f32 %v615, 1.3333334
    %v696 = vsub.f32 %v616, 1.3333334
    %v697 = vmul.f32 %v693, %v529
    %v698 = vmul.f32 %v694, %v530
    %v699 = vmul.f32 %v695, %v531
    %v700 = vmul.f32 %v696, %v532
    %v701 = vsub.f32 2.6666667, %v613
    %v702 = vsub.f32 2.6666667, %v614
    %v703 = vsub.f32 2.6666667, %v615
    %v704 = vsub.f32 2.6666667, %v616
    %v705 = vmul.f32 %v701, %v549
    %v706 = vmul.f32 %v702, %v550
    %v707 = vmul.f32 %v703, %v551
    %v708 = vmul.f32 %v704, %v552
    %v709 = vadd.f32 %v697, %v705
    %v710 = vadd.f32 %v698, %v706
    %v711 = vadd.f32 %v699, %v707
    %v712 = vadd.f32 %v700, %v708
    %v713 = vsub.f32 %v613, 1.6666666
    %v714 = vsub.f32 %v614, 1.6666666
    %v715 = vsub.f32 %v615, 1.6666666
    %v716 = vsub.f32 %v616, 1.6666666
    %v717 = vmul.f32 %v713, %v549
    %v718 = vmul.f32 %v714, %v550
    %v719 = vmul.f32 %v715, %v551
    %v720 = vmul.f32 %v716, %v552
    %v721 = vsub.f32 3.0, %v613
    %v722 = vsub.f32 3.0, %v614
    %v723 = vsub.f32 3.0, %v615
    %v724 = vsub.f32 3.0, %v616
    %v725 = vmul.f32 %v721, %v569
    %v726 = vmul.f32 %v722, %v570
    %v727 = vmul.f32 %v723, %v571
    %v728 = vmul.f32 %v724, %v572
    %v729 = vadd.f32 %v717, %v725
    %v730 = vadd.f32 %v718, %v726
    %v731 = vadd.f32 %v719, %v727
    %v732 = vadd.f32 %v720, %v728
    %v733 = vsub.f32 %v613, 2.0
    %v734 = vsub.f32 %v614, 2.0
    %v735 = vsub.f32 %v615, 2.0
    %v736 = vsub.f32 %v616, 2.0
    %v737 = vmul.f32 %v733, %v569
    %v738 = vmul.f32 %v734, %v570
    %v739 = vmul.f32 %v735, %v571
    %v740 = vmul.f32 %v736, %v572
    %v741 = vsub.f32 3.3333333, %v613
    %v742 = vsub.f32 3.3333333, %v614
    %v743 = vsub.f32 3.3333333, %v615
    %v744 = vsub.f32 3.3333333, %v616
    %v745 = vmul.f32 %v741, %v589
    %v746 = vmul.f32 %v742, %v590
    %v747 = vmul.f32 %v743, %v591
    %v748 = vmul.f32 %v744, %v592
    %v749 = vadd.f32 %v737, %v745
    %v750 = vadd.f32 %v738, %v746
    %v751 = vadd.f32 %v739, %v747
    %v752 = vadd.f32 %v740, %v748
    %v753 = vsub.f32 %v613, 2.3333333
    %v754 = vsub.f32 %v614, 2.3333333
    %v755 = vsub.f32 %v615, 2.3333333
    %v756 = vsub.f32 %v616, 2.3333333
    %v757 = vmul.f32 %v753, %v589
    %v758 = vmul.f32 %v754, %v590
    %v759 = vmul.f32 %v755, %v591
    %v760 = vmul.f32 %v756, %v592
    %v761 = vsub.f32 3.6666667, %v613
    %v762 = vsub.f32 3.6666667, %v614
    %v763 = vsub.f32 3.6666667, %v615
    %v764 = vsub.f32 3.6666667, %v616
    %v765 = vmul.f32 %v761, %v609
    %v766 = vmul.f32 %v762, %v610
    %v767 = vmul.f32 %v763, %v611
    %v768 = vmul.f32 %v764, %v612
    %v769 = vadd.f32 %v757, %v765
    %v770 = vadd.f32 %v758, %v766
    %v771 = vadd.f32 %v759, %v767
    %v772 = vadd.f32 %v760, %v768
    %vm773 = vcmask 261120
    %v775 = vsel %vm773, %v241, 0
    %v778 = vsel %vm773, %v244, 0
    %780 = vmatpush.msra.mxu0 %v672
    %781 = vmatpush.msra.mxu0 %v671
    %782 = vmatpush.msra.mxu0 %v670
    %783 = vmatpush.msra.mxu0 %v669
    %784 = vmatpush.msra.mxu0 %v652
    %785 = vmatpush.msra.mxu0 %v651
    %786 = vmatpush.msra.mxu0 %v650
    %787 = vmatpush.msra.mxu0 %v649
    %788 = vmatpush.msra.mxu0 %v632
    %789 = vmatpush.msra.mxu0 %v631
    %790 = vmatpush.msra.mxu0 %v630
    %791 = vmatpush.msra.mxu0 %v629
    %792 = vmatpush.msra.mxu0 %v264
    %793 = vmatpush.msra.mxu0 %v263
    %794 = vmatpush.msra.mxu0 %v262
    %795 = vmatpush.msra.mxu0 %v261
    %796 = vmatmul.f32.gmra.mxu0 %v239
    %v797 = vpop.f32.mrf.mxu0
    %v798 = vadd.f32 0.0, %v797
    %799 = vmatmul.f32.gmra.mxu0 %v242
    %v800 = vpop.f32.mrf.mxu0
    %v801 = vadd.f32 0.0, %v800
    %802 = vdwg.mxu0
    %803 = vmatpush.msra.mxu0 %v752
    %804 = vmatpush.msra.mxu0 %v751
    %805 = vmatpush.msra.mxu0 %v750
    %806 = vmatpush.msra.mxu0 %v749
    %807 = vmatpush.msra.mxu0 %v732
    %808 = vmatpush.msra.mxu0 %v731
    %809 = vmatpush.msra.mxu0 %v730
    %810 = vmatpush.msra.mxu0 %v729
    %811 = vmatpush.msra.mxu0 %v712
    %812 = vmatpush.msra.mxu0 %v711
    %813 = vmatpush.msra.mxu0 %v710
    %814 = vmatpush.msra.mxu0 %v709
    %815 = vmatpush.msra.mxu0 %v692
    %816 = vmatpush.msra.mxu0 %v691
    %817 = vmatpush.msra.mxu0 %v690
    %818 = vmatpush.msra.mxu0 %v689
    %819 = vmatmul.f32.gmra.mxu0 %v240
    %v820 = vpop.f32.mrf.mxu0
    %v821 = vadd.f32 %v798, %v820
    %822 = vmatmul.f32.gmra.mxu0 %v243
    %v823 = vpop.f32.mrf.mxu0
    %v824 = vadd.f32 %v801, %v823
    %825 = vdwg.mxu0
    %826 = vmatpush.msra.mxu0 0.0
    %827 = vmatpush.msra.mxu0 0.0
    %828 = vmatpush.msra.mxu0 0.0
    %829 = vmatpush.msra.mxu0 0.0
    %830 = vmatpush.msra.mxu0 0.0
    %831 = vmatpush.msra.mxu0 0.0
    %832 = vmatpush.msra.mxu0 0.0
    %833 = vmatpush.msra.mxu0 0.0
    %834 = vmatpush.msra.mxu0 0.0
    %835 = vmatpush.msra.mxu0 0.0
    %836 = vmatpush.msra.mxu0 0.0
    %837 = vmatpush.msra.mxu0 0.0
    %838 = vmatpush.msra.mxu0 %v772
    %839 = vmatpush.msra.mxu0 %v771
    %840 = vmatpush.msra.mxu0 %v770
    %841 = vmatpush.msra.mxu0 %v769
    %842 = vmatmul.f32.gmra.mxu0 %v775
    %v843 = vpop.f32.mrf.mxu0
    %v844 = vadd.f32 %v821, %v843
    %845 = vmatmul.f32.gmra.mxu0 %v778
    %v846 = vpop.f32.mrf.mxu0
    %v847 = vadd.f32 %v824, %v846
    %848 = vdwg.mxu0
    %849 = vst [vmem:[#allocation8] sm:$0xff] %v844
    %850 = vst [vmem:[#allocation8 + $0x8] sm:$0xff] %v847
    // Predicated region
    $region26: #{tpu_custom_call.1} parent=1 // pred_check
      _
    $region27: #{tpu_custom_call.1} parent=1 // pred_check_branch
      %852 = sbr.rel (0) target = $region29
    $region28: #{tpu_custom_call.1} parent=1 // pred_region
      %854 = vsyncadd [#allocation4], 0
      %s855 = sshll.u32 [#allocation8], 4
      %s856 = int_to_ptr.vmem [resolvable:$true] %s855
      %s857 = sshll.u32 %s3, 4
      %s858 = int_to_ptr.hbm [resolvable:$true] %s857
      %863 = dma.vmem_to_hbm [thread:$0]  %s856, 256, %s858, [#allocation4], 128, 128, 8
    $region29: #{tpu_custom_call.1} parent=1 // pred_fallthru
      _
    // Predicated region
    $region30: #{tpu_custom_call.1} parent=1 // pred_check
      _
    $region31: #{tpu_custom_call.1} parent=1 // pred_check_branch
      %865 = sbr.rel (0) target = $region33
    $region32: #{tpu_custom_call.1} parent=1 // pred_region
      %867 = dma.done [#allocation4], 256
    $region33: #{tpu_custom_call.1} parent=1 // pred_fallthru
      _
    %868 = vsyncpa [#allocation3], 1
    %869 = vsyncpa [#allocation6], 1
    %870 = vsyncpa [#allocation4], 1

</llo_original>
